<compile_context>
chip_gen: v7x
topology: tpu7x:2x2x1
jax: 0.10.0
libtpu: 0.0.40
codegen_flags: <defaults>
</compile_context>

<pallas_src>
import jax
import jax.numpy as jnp
from jax.experimental import pallas as pl
from jax.experimental.pallas import tpu as pltpu


def graphconv_kernel(edge_ref, xaug_ref, adj_ref, wcat_ref, out_ref):
    # edge_ref: (N, M*E)        flattened edge features
    # xaug_ref: (N, 1 + D)      [ones | x]
    # adj_ref : (N, N)
    # wcat_ref: (M*E + 1 + D, O)  [We_stacked/M ; zero row ; Wn]
    # out_ref : (N, O)

    # adj @ [1 | x] -> column 0 is the node degree, columns 1: are adj @ x.
    ax_aug = jnp.dot(adj_ref[...], xaug_ref[...],
                     preferred_element_type=jnp.float32)             # (N, 1+D)  MXU
    degree = ax_aug[:, 0:1]                                          # (N, 1)  exact for 0/1 adj

    # Single fused projection: [edge_flat | degree | adj@x] @ W_cat.
    x_cat = jnp.concatenate(
        [edge_ref[...], ax_aug.astype(edge_ref.dtype)], axis=-1)     # (N, M*E+1+D)
    outputs = jnp.dot(x_cat, wcat_ref[...],
                      preferred_element_type=jnp.float32)            # (N, O)  MXU
    # bias=False in the reference module (register_parameter('bias', None)).

    # node_weight = degree with zero-degree rows replaced by 1, then normalize.
    nw = jnp.where(degree == 0.0, 1.0, degree)
    out_ref[...] = (outputs * pl.reciprocal(nw, approx=True)).astype(out_ref.dtype)


def prepare_graphconv_weights(weights_edge, weights_node, num_paths):
    """Host-side (one-time) parameter transform: stack the edge weight over the
    M paths (absorbing the 1/M mean), insert a zero row for the degree column,
    and concatenate with the node weight -> single (M*E + 1 + D, O) operand."""
    E, O = weights_edge.shape
    w_edge_stacked = jnp.tile(weights_edge, (num_paths, 1)) / float(num_paths)  # (M*E, O)
    zero_row = jnp.zeros((1, O), weights_edge.dtype)                            # degree column
    return jnp.concatenate([w_edge_stacked, zero_row, weights_node], axis=0)


def graph_conv(edge_inputs, inputs, adjacency_matrix, w_cat,
               input_dtype=jnp.float32):
    """Forward pass of GraphConv. `w_cat` comes from prepare_graphconv_weights.

    input_dtype=jnp.bfloat16 is recommended on v6e/v7x (f32 accumulation is
    kept via preferred_element_type); f32 default keeps v5e's epilogue native.
    """
    N, D = inputs.shape
    _, M, E = edge_inputs.shape
    O = w_cat.shape[1]

    edge_flat = edge_inputs.reshape(N, M * E).astype(input_dtype)     # (N, M*E)
    x_aug = jnp.concatenate(
        [jnp.ones((N, 1), input_dtype), inputs.astype(input_dtype)], axis=1)  # (N, 1+D)
    adj = adjacency_matrix.astype(input_dtype)
    w_cat = w_cat.astype(input_dtype)

    vmem = pl.BlockSpec(memory_space=pltpu.MemorySpace.VMEM)
    return pl.pallas_call(
        graphconv_kernel,
        out_shape=jax.ShapeDtypeStruct((N, O), jnp.float32),
        in_specs=[vmem, vmem, vmem, vmem],
        out_specs=vmem,
    )(edge_flat, x_aug, adj, w_cat)


def xavier_uniform(key, fan_in, fan_out):
    bound = (6.0 / (fan_in + fan_out)) ** 0.5
    return jax.random.uniform(key, (fan_in, fan_out), jnp.float32, -bound, bound)


if __name__ == "__main__":
    # Small shapes consistent with the module's forward.
    N = 8      # num_entity
    M = 8      # paths / neighbors per entity (dim 1 of edge_inputs)
    D = 32     # input_dim
    E = 16     # edge_dim
    O = 128    # output_dim

    key = jax.random.PRNGKey(0)
    k_x, k_e, k_a, k_we, k_wn = jax.random.split(key, 5)

    inputs = jax.random.normal(k_x, (N, D), jnp.float32)
    edge_inputs = jax.random.normal(k_e, (N, M, E), jnp.float32)
    # Random 0/1 adjacency (some rows may be all-zero, exercising the
    # node_weight_zero path).
    adjacency = (jax.random.uniform(k_a, (N, N)) > 0.6).astype(jnp.float32)

    # Deterministic xavier_uniform_ parameter init (module __init__).
    weights_edge = xavier_uniform(k_we, E, O)
    weights_node = xavier_uniform(k_wn, D, O)

    w_cat = prepare_graphconv_weights(weights_edge, weights_node, M)
    out = graph_conv(edge_inputs, inputs, adjacency, w_cat)
    out = jax.block_until_ready(out)

    # Pure-JAX reference of the exact PyTorch semantics at HIGHEST precision.
    hp = jax.lax.Precision.HIGHEST
    oe = jnp.mean(jnp.einsum('ijk,kp->ijp', edge_inputs, weights_edge,
                             precision=hp), axis=1)
    on = jnp.matmul(jnp.matmul(adjacency, inputs, precision=hp),
                    weights_node, precision=hp)
    nw = jnp.sum(adjacency, axis=1)
    nw = nw + (nw == 0).astype(jnp.float32)
    ref = (oe + on) / nw[:, None]

    # Tolerance covers the EUP approximate reciprocal and default-precision
    # MXU passes; the structural rewrite (stacked/fused weights, degree column)
    # is mathematically exact.
    assert jnp.allclose(out, ref, atol=2e-2, rtol=2e-2), "mismatch vs reference"

    print("KERNEL_OK")
</pallas_src>

<mosaic_0001>
module attributes {stable_mosaic.version = 11 : i64} {
  func.func @graphconv_kernel(%arg0: memref<8x128xf32, #tpu.memory_space<vmem>>, %arg1: memref<8x33xf32, #tpu.memory_space<vmem>>, %arg2: memref<8x8xf32, #tpu.memory_space<vmem>>, %arg3: memref<161x128xf32, #tpu.memory_space<vmem>>, %arg4: memref<8x128xf32, #tpu.memory_space<vmem>>) attributes {dimension_semantics = [], scalar_prefetch = 0 : i64, scratch_operands = 0 : i64, tpu.core_type = #tpu.core_type<tc>} {
    %c0 = arith.constant 0 : index
    %c0_0 = arith.constant 0 : index
    %0 = vector.load %arg2[%c0, %c0_0] : memref<8x8xf32, #tpu.memory_space<vmem>>, vector<8x8xf32>
    %c0_1 = arith.constant 0 : index
    %c0_2 = arith.constant 0 : index
    %1 = vector.load %arg1[%c0_1, %c0_2] : memref<8x33xf32, #tpu.memory_space<vmem>>, vector<8x33xf32>
    %cst = arith.constant dense<0.000000e+00> : vector<8x33xf32>
    %2 = tpu.matmul %0, %1, %cst {dimension_numbers = #tpu.dot_dimension_numbers<[1], [0], [0], [1], [0, 0, 1, 1], [], []>} : vector<8x8xf32>, vector<8x33xf32>, vector<8x33xf32> -> vector<8x33xf32>
    %3 = vector.extract_strided_slice %2 {offsets = [0, 0], sizes = [8, 1], strides = [1, 1]} : vector<8x33xf32> to vector<8x1xf32>
    %c0_3 = arith.constant 0 : index
    %c0_4 = arith.constant 0 : index
    %4 = vector.load %arg0[%c0_3, %c0_4] : memref<8x128xf32, #tpu.memory_space<vmem>>, vector<8x128xf32>
    %5 = tpu.concatenate %4, %2 in 1 : vector<8x128xf32>, vector<8x33xf32> -> vector<8x161xf32>
    %c0_5 = arith.constant 0 : index
    %c0_6 = arith.constant 0 : index
    %6 = vector.load %arg3[%c0_5, %c0_6] : memref<161x128xf32, #tpu.memory_space<vmem>>, vector<161x128xf32>
    %cst_7 = arith.constant dense<0.000000e+00> : vector<8x128xf32>
    %7 = tpu.matmul %5, %6, %cst_7 {dimension_numbers = #tpu.dot_dimension_numbers<[1], [0], [0], [1], [0, 0, 1, 1], [], []>} : vector<8x161xf32>, vector<161x128xf32>, vector<8x128xf32> -> vector<8x128xf32>
    %cst_8 = arith.constant 0.000000e+00 : f32
    %8 = vector.broadcast %cst_8 : f32 to vector<8x1xf32>
    %9 = arith.cmpf oeq, %3, %8 : vector<8x1xf32>
    %cst_9 = arith.constant 1.000000e+00 : f32
    %10 = vector.broadcast %cst_9 : f32 to vector<8x1xf32>
    %11 = arith.select %9, %10, %3 : vector<8x1xi1>, vector<8x1xf32>
    %12 = tpu.reciprocal %11 {approx = true} : vector<8x1xf32> -> vector<8x1xf32>
    %13 = vector.broadcast %12 : vector<8x1xf32> to vector<8x128xf32>
    %14 = arith.mulf %7, %13 : vector<8x128xf32>
    %c0_10 = arith.constant 0 : index
    %c0_11 = arith.constant 0 : index
    %15 = vector.load %arg4[%c0_10, %c0_11] : memref<8x128xf32, #tpu.memory_space<vmem>>, vector<8x128xf32>
    tpu.vector_store %arg4[%c0_10, %c0_11], %14 {strides = array<i32>} : memref<8x128xf32, #tpu.memory_space<vmem>>, vector<8x128xf32>,
    return
  }
}

</mosaic_0001>

<llo_original>
// kernel: tpu_custom_call.1
$region0: #{tpu_custom_call.1}
  #allocation0 [shape = 'u32[]', space=smem, size = 0x4, offset = 0x4, fixed_abs, tag = 'smem constant byte address 0x4 - core index']
  #allocation1 [shape = 'u32[144,128]{1,0:T(1,128)}', space=vmem, size = 0x12000, scoped, tag = 'internal scratch']
  %s0 = inlined_call_operand.hbm [shape: f32[8,128], index: 0, kind: input, shape index: {}]
  %s1 = inlined_call_operand.hbm [shape: f32[8,33], index: 1, kind: input, shape index: {}]
  %s2 = inlined_call_operand.hbm [shape: f32[8,8], index: 2, kind: input, shape index: {}]
  %s3 = inlined_call_operand.hbm [shape: f32[161,128], index: 3, kind: input, shape index: {}]
  %s4 = inlined_call_operand.hbm [shape: f32[8,128], index: 4, kind: output, shape index: {}]
  %s5 = sld [smem:[#allocation0]]
  $region42: #{tpu_custom_call.1} parent=0
    _
  %s7 = ssub.s32 1, %s5
  %s8 = scalar_select 0, %s7, %s5
  $region1: #{tpu_custom_call.1} parent=0
    #allocation2 [shape = 'u8[4096]{0}', space=vmem, size = 0x1000, scoped, tag = 'input window, operand 0, single buffered']
    #allocation3 [shape = 's32[1]{0}', space=sflag, size = 0x4, scoped, tag = 'scoped memory for tpu_custom_call.1']
    #allocation4 [shape = 's32[1]{0}', space=sflag, size = 0x4, scoped, tag = 'scoped memory for tpu_custom_call.1']
    #allocation5 [shape = 'u8[4096]{0}', space=vmem, size = 0x1000, scoped, tag = 'input window, operand 1, single buffered']
    #allocation6 [shape = 's32[1]{0}', space=sflag, size = 0x4, scoped, tag = 'scoped memory for tpu_custom_call.1']
    #allocation7 [shape = 'u8[4096]{0}', space=vmem, size = 0x1000, scoped, tag = 'input window, operand 2, single buffered']
    #allocation8 [shape = 'u8[86016]{0}', space=vmem, size = 0x15000, scoped, tag = 'input window, operand 3, single buffered']
    #allocation9 [shape = 's32[1]{0}', space=sflag, size = 0x4, scoped, tag = 'scoped memory for tpu_custom_call.1']
    #allocation10 [shape = 'u8[4096]{0}', space=vmem, size = 0x1000, scoped, tag = 'output window, operand 0, single buffered']
    %9 = vsyncpa [#allocation3], 0
    %10 = vsyncpa [#allocation6], 0
    %11 = vsyncpa [#allocation9], 0
    %12 = vsyncpa [#allocation4], 0
    // Predicated region
    $region2: #{tpu_custom_call.1} parent=1 // pred_check
      _
    $region3: #{tpu_custom_call.1} parent=1 // pred_check_branch
      %14 = sbr.rel (0) target = $region5
    $region4: #{tpu_custom_call.1} parent=1 // pred_region
      %s16 = ssub.s32 128, 128
      %17 = vsyncadd [#allocation3], %s16
      %s19 = sshll.u32 [#allocation2], 4
      %s20 = int_to_ptr.vmem [resolvable:$true] %s19
      %22 = dma.hbm_to_vmem [thread:$0]  %s0, 128, %s20, [#allocation3]
    $region5: #{tpu_custom_call.1} parent=1 // pred_fallthru
      _
    // Predicated region
    $region6: #{tpu_custom_call.1} parent=1 // pred_check
      _
    $region7: #{tpu_custom_call.1} parent=1 // pred_check_branch
      %24 = sbr.rel (0) target = $region9
    $region8: #{tpu_custom_call.1} parent=1 // pred_region
      %s26 = ssub.s32 128, 128
      %27 = vsyncadd [#allocation6], %s26
      %s29 = sshll.u32 [#allocation5], 4
      %s30 = int_to_ptr.vmem [resolvable:$true] %s29
      %32 = dma.hbm_to_vmem [thread:$0]  %s1, 128, %s30, [#allocation6]
    $region9: #{tpu_custom_call.1} parent=1 // pred_fallthru
      _
    // Predicated region
    $region10: #{tpu_custom_call.1} parent=1 // pred_check
      _
    $region11: #{tpu_custom_call.1} parent=1 // pred_check_branch
      %34 = sbr.rel (0) target = $region13
    $region12: #{tpu_custom_call.1} parent=1 // pred_region
      %s36 = ssub.s32 128, 128
      %37 = vsyncadd [#allocation6], %s36
      %s39 = sshll.u32 [#allocation7], 4
      %s40 = int_to_ptr.vmem [resolvable:$true] %s39
      %42 = dma.hbm_to_vmem [thread:$0]  %s2, 128, %s40, [#allocation6]
    $region13: #{tpu_custom_call.1} parent=1 // pred_fallthru
      _
    // Predicated region
    $region14: #{tpu_custom_call.1} parent=1 // pred_check
      _
    $region15: #{tpu_custom_call.1} parent=1 // pred_check_branch
      %44 = sbr.rel (0) target = $region17
    $region16: #{tpu_custom_call.1} parent=1 // pred_region
      %s46 = ssub.s32 2688, 2688
      %47 = vsyncadd [#allocation9], %s46
      %s48 = sshll.u32 [#allocation8], 4
      %s49 = int_to_ptr.vmem [resolvable:$true] %s48
      %54 = dma.hbm_to_vmem [thread:$0]  %s3, 2688, %s49, [#allocation9], 128, 128, 8
    $region17: #{tpu_custom_call.1} parent=1 // pred_fallthru
      _
    // Predicated region
    $region18: #{tpu_custom_call.1} parent=1 // pred_check
      _
    $region19: #{tpu_custom_call.1} parent=1 // pred_check_branch
      %56 = sbr.rel (0) target = $region21
    $region20: #{tpu_custom_call.1} parent=1 // pred_region
      %57 = dma.done [#allocation3], 128
    $region21: #{tpu_custom_call.1} parent=1 // pred_fallthru
      _
    // Predicated region
    $region22: #{tpu_custom_call.1} parent=1 // pred_check
      _
    $region23: #{tpu_custom_call.1} parent=1 // pred_check_branch
      %59 = sbr.rel (0) target = $region25
    $region24: #{tpu_custom_call.1} parent=1 // pred_region
      %60 = dma.done [#allocation6], 128
    $region25: #{tpu_custom_call.1} parent=1 // pred_fallthru
      _
    // Predicated region
    $region26: #{tpu_custom_call.1} parent=1 // pred_check
      _
    $region27: #{tpu_custom_call.1} parent=1 // pred_check_branch
      %62 = sbr.rel (0) target = $region29
    $region28: #{tpu_custom_call.1} parent=1 // pred_region
      %63 = dma.done [#allocation6], 128
    $region29: #{tpu_custom_call.1} parent=1 // pred_fallthru
      _
    // Predicated region
    $region30: #{tpu_custom_call.1} parent=1 // pred_check
      _
    $region31: #{tpu_custom_call.1} parent=1 // pred_check_branch
      %65 = sbr.rel (0) target = $region33
    $region32: #{tpu_custom_call.1} parent=1 // pred_region
      %66 = dma.done [#allocation9], 2688
    $region33: #{tpu_custom_call.1} parent=1 // pred_fallthru
      _
    %v67 = vld [vmem:[#allocation7] sm:$0xff]
    %v68 = vld [vmem:[#allocation5] sm:$0xff]
    %vm69 = vcmask 64512
    %v71 = vsel %vm69, %v67, 0
    %73 = vmatprep.subr.mxu0 0.0
    %74 = vmatpush1.msra.mxu0 %v68
    %75 = vmatprep.subr.mxu0 0.0
    %76 = vmatpush1.msra.mxu0 0.0
    %77 = vmatprep.subr.mxu0 0.0
    %78 = vmatpush1.msra.mxu0 0.0
    %79 = vmatprep.subr.mxu0 0.0
    %80 = vmatpush1.msra.mxu0 0.0
    %81 = vmatprep.subr.mxu0 0.0
    %82 = vmatpush1.msra.mxu0 0.0
    %83 = vmatprep.subr.mxu0 0.0
    %84 = vmatpush1.msra.mxu0 0.0
    %85 = vmatprep.subr.mxu0 0.0
    %86 = vmatpush1.msra.mxu0 0.0
    %87 = vmatprep.subr.mxu0 0.0
    %88 = vmatpush1.msra.mxu0 0.0
    %89 = vmatprep.subr.mxu0 0.0
    %90 = vmatpush1.msra.mxu0 0.0
    %91 = vmatprep.subr.mxu0 0.0
    %92 = vmatpush1.msra.mxu0 0.0
    %93 = vmatprep.subr.mxu0 0.0
    %94 = vmatpush1.msra.mxu0 0.0
    %95 = vmatprep.subr.mxu0 0.0
    %96 = vmatpush1.msra.mxu0 0.0
    %97 = vmatprep.subr.mxu0 0.0
    %98 = vmatpush1.msra.mxu0 0.0
    %99 = vmatprep.subr.mxu0 0.0
    %100 = vmatpush1.msra.mxu0 0.0
    %101 = vmatprep.subr.mxu0 0.0
    %102 = vmatpush1.msra.mxu0 0.0
    %103 = vmatprep.subr.mxu0 0.0
    %104 = vmatpush1.msra.mxu0 0.0
    %105 = vmatprep.subr.mxu0 0.0
    %106 = vmatpush1.msra.mxu0 0.0
    %107 = vmatprep.subr.mxu0 0.0
    %108 = vmatpush1.msra.mxu0 0.0
    %109 = vmatprep.subr.mxu0 0.0
    %110 = vmatpush1.msra.mxu0 0.0
    %111 = vmatprep.subr.mxu0 0.0
    %112 = vmatpush1.msra.mxu0 0.0
    %113 = vmatprep.subr.mxu0 0.0
    %114 = vmatpush1.msra.mxu0 0.0
    %115 = vmatprep.subr.mxu0 0.0
    %116 = vmatpush1.msra.mxu0 0.0
    %117 = vmatprep.subr.mxu0 0.0
    %118 = vmatpush1.msra.mxu0 0.0
    %119 = vmatprep.subr.mxu0 0.0
    %120 = vmatpush1.msra.mxu0 0.0
    %121 = vmatprep.subr.mxu0 0.0
    %122 = vmatpush1.msra.mxu0 0.0
    %123 = vmatprep.subr.mxu0 0.0
    %124 = vmatpush1.msra.mxu0 0.0
    %125 = vmatprep.subr.mxu0 0.0
    %126 = vmatpush1.msra.mxu0 0.0
    %127 = vmatprep.subr.mxu0 0.0
    %128 = vmatpush1.msra.mxu0 0.0
    %129 = vmatprep.subr.mxu0 0.0
    %130 = vmatpush1.msra.mxu0 0.0
    %131 = vmatprep.subr.mxu0 0.0
    %132 = vmatpush1.msra.mxu0 0.0
    %133 = vmatprep.subr.mxu0 0.0
    %134 = vmatpush1.msra.mxu0 0.0
    %135 = vmatprep.subr.mxu0 0.0
    %136 = vmatpush1.msra.mxu0 0.0
    %137 = vmatprep.mubr.f32.mxu0 0.0
    %138 = vmatmul.mubr.f32.gmra.mrb[0].mxu0 %v71
    %v139 = vpop.f32.mrb[0].mxu0
    %v140 = vadd.f32 0.0, %v139
    %v141 = vpop.f32.mrb[0].mxu0
    %142 = vdwg.mxu0
    %v143 = vld [vmem:[#allocation2] sm:$0xff]
    %v144 = vld [vmem:[#allocation8] sm:$0xff]
    %v145 = vld [vmem:[#allocation8 + $0x8] sm:$0xff]
    %v146 = vld [vmem:[#allocation8 + $0x10] sm:$0xff]
    %v147 = vld [vmem:[#allocation8 + $0x18] sm:$0xff]
    %v148 = vld [vmem:[#allocation8 + $0x20] sm:$0xff]
    %v149 = vld [vmem:[#allocation8 + $0x28] sm:$0xff]
    %v150 = vld [vmem:[#allocation8 + $0x30] sm:$0xff]
    %v151 = vld [vmem:[#allocation8 + $0x38] sm:$0xff]
    %v152 = vld [vmem:[#allocation8 + $0x40] sm:$0xff]
    %v153 = vld [vmem:[#allocation8 + $0x48] sm:$0xff]
    %v154 = vld [vmem:[#allocation8 + $0x50] sm:$0xff]
    %v155 = vld [vmem:[#allocation8 + $0x58] sm:$0xff]
    %v156 = vld [vmem:[#allocation8 + $0x60] sm:$0xff]
    %v157 = vld [vmem:[#allocation8 + $0x68] sm:$0xff]
    %v158 = vld [vmem:[#allocation8 + $0x70] sm:$0xff]
    %v159 = vld [vmem:[#allocation8 + $0x78] sm:$0xff]
    %v160 = vld [vmem:[#allocation8 + $0x80] sm:$0xff]
    %v161 = vld [vmem:[#allocation8 + $0x88] sm:$0xff]
    %v162 = vld [vmem:[#allocation8 + $0x90] sm:$0xff]
    %v163 = vld [vmem:[#allocation8 + $0x98] sm:$0xff]
    %v164 = vld [vmem:[#allocation8 + $0xa0] sm:$0x1]
    %vm165 = vcmask 269312
    %v167 = vsel %vm165, %v140, 0
    %vm169 = vcmask 1040384
    %v171 = vsel %vm169, %v164, 0
    %173 = vmatprep.subr.mxu0 0.0
    %174 = vmatpush1.msra.mxu0 %v144
    %175 = vmatprep.subr.mxu0 0.0
    %176 = vmatpush1.msra.mxu0 %v145
    %177 = vmatprep.subr.mxu0 0.0
    %178 = vmatpush1.msra.mxu0 %v146
    %179 = vmatprep.subr.mxu0 0.0
    %180 = vmatpush1.msra.mxu0 %v147
    %181 = vmatprep.subr.mxu0 0.0
    %182 = vmatpush1.msra.mxu0 %v148
    %183 = vmatprep.subr.mxu0 0.0
    %184 = vmatpush1.msra.mxu0 %v149
    %185 = vmatprep.subr.mxu0 0.0
    %186 = vmatpush1.msra.mxu0 %v150
    %187 = vmatprep.subr.mxu0 0.0
    %188 = vmatpush1.msra.mxu0 %v151
    %189 = vmatprep.subr.mxu0 0.0
    %190 = vmatpush1.msra.mxu0 %v152
    %191 = vmatprep.subr.mxu0 0.0
    %192 = vmatpush1.msra.mxu0 %v153
    %193 = vmatprep.subr.mxu0 0.0
    %194 = vmatpush1.msra.mxu0 %v154
    %195 = vmatprep.subr.mxu0 0.0
    %196 = vmatpush1.msra.mxu0 %v155
    %197 = vmatprep.subr.mxu0 0.0
    %198 = vmatpush1.msra.mxu0 %v156
    %199 = vmatprep.subr.mxu0 0.0
    %200 = vmatpush1.msra.mxu0 %v157
    %201 = vmatprep.subr.mxu0 0.0
    %202 = vmatpush1.msra.mxu0 %v158
    %203 = vmatprep.subr.mxu0 0.0
    %204 = vmatpush1.msra.mxu0 %v159
    %205 = vmatprep.subr.mxu0 0.0
    %206 = vmatpush1.msra.mxu0 %v160
    %207 = vmatprep.subr.mxu0 0.0
    %208 = vmatpush1.msra.mxu0 %v161
    %209 = vmatprep.subr.mxu0 0.0
    %210 = vmatpush1.msra.mxu0 %v162
    %211 = vmatprep.subr.mxu0 0.0
    %212 = vmatpush1.msra.mxu0 %v163
    %213 = vmatprep.subr.mxu0 0.0
    %214 = vmatpush1.msra.mxu0 %v171
    %215 = vmatprep.subr.mxu0 0.0
    %216 = vmatpush1.msra.mxu0 0.0
    %217 = vmatprep.subr.mxu0 0.0
    %218 = vmatpush1.msra.mxu0 0.0
    %219 = vmatprep.subr.mxu0 0.0
    %220 = vmatpush1.msra.mxu0 0.0
    %221 = vmatprep.subr.mxu0 0.0
    %222 = vmatpush1.msra.mxu0 0.0
    %223 = vmatprep.subr.mxu0 0.0
    %224 = vmatpush1.msra.mxu0 0.0
    %225 = vmatprep.subr.mxu0 0.0
    %226 = vmatpush1.msra.mxu0 0.0
    %227 = vmatprep.subr.mxu0 0.0
    %228 = vmatpush1.msra.mxu0 0.0
    %229 = vmatprep.subr.mxu0 0.0
    %230 = vmatpush1.msra.mxu0 0.0
    %231 = vmatprep.subr.mxu0 0.0
    %232 = vmatpush1.msra.mxu0 0.0
    %233 = vmatprep.subr.mxu0 0.0
    %234 = vmatpush1.msra.mxu0 0.0
    %235 = vmatprep.subr.mxu0 0.0
    %236 = vmatpush1.msra.mxu0 0.0
    %237 = vmatprep.mubr.f32.mxu0 %v167
    %238 = vmatmul.mubr.f32.gmra.mrb[0].mxu0 %v143
    %v239 = vpop.f32.mrb[0].mxu0
    %v240 = vadd.f32 0.0, %v239
    %v241 = vpop.f32.mrb[0].mxu0
    %242 = vdwg.mxu0
    %vm243 = vcmp.eq.f32.partialorder %v140, 0.0
    %v244 = vsel %vm243, 1.0, %v140
    %v245 = vrcp.pop %v244
    %247 = vset.pattern.permute.xlu0 0
    %248 = vperm.xlu0 %247, %v245
    %v249 = vpop.permute.xlu0 %248
    %v251 = vmul.f32 %v240, %v249
    %252 = vst [vmem:[#allocation10] sm:$0xff] %v251
    // Predicated region
    $region34: #{tpu_custom_call.1} parent=1 // pred_check
      _
    $region35: #{tpu_custom_call.1} parent=1 // pred_check_branch
      %254 = sbr.rel (0) target = $region37
    $region36: #{tpu_custom_call.1} parent=1 // pred_region
      %s256 = ssub.s32 128, 128
      %257 = vsyncadd [#allocation4], %s256
      %s259 = sshll.u32 [#allocation10], 4
      %s260 = int_to_ptr.vmem [resolvable:$true] %s259
      %262 = dma.vmem_to_hbm [thread:$0]  %s260, 128, %s4, [#allocation4]
    $region37: #{tpu_custom_call.1} parent=1 // pred_fallthru
      _
    // Predicated region
    $region38: #{tpu_custom_call.1} parent=1 // pred_check
      _
    $region39: #{tpu_custom_call.1} parent=1 // pred_check_branch
      %264 = sbr.rel (0) target = $region41
    $region40: #{tpu_custom_call.1} parent=1 // pred_region
      %265 = dma.done [#allocation4], 128
    $region41: #{tpu_custom_call.1} parent=1 // pred_fallthru
      _
    %266 = vsyncpa [#allocation3], 1
    %267 = vsyncpa [#allocation6], 1
    %268 = vsyncpa [#allocation9], 1
    %269 = vsyncpa [#allocation4], 1

</llo_original>
